<compile_context>
chip_gen: v5e
topology: v5e:2x2
jax: 0.10.0
libtpu: 0.0.40
codegen_flags: <defaults>
</compile_context>

<pallas_src>
import functools

import jax
import jax.numpy as jnp
from jax.experimental import pallas as pl
from jax.experimental.pallas import tpu as pltpu

Z_DIM = 100
HIDDEN_DIM = 256
IMAGE_DIM = 784   # e.g. 28*28 MNIST image
BATCH = 8         # small example batch


def _round_up(n: int, m: int) -> int:
    return ((n + m - 1) // m) * m


def generator_kernel(x_ref, w1_ref, b1_ref, w2_ref, b2_ref, o_ref):
    # First linear + ReLU. bf16 MXU inputs, f32 accumulation.
    h = jnp.dot(x_ref[...], w1_ref[...], preferred_element_type=jnp.float32)
    h = jnp.maximum(h + b1_ref[...], 0.0)          # bias (1, H) broadcasts; ReLU on VPU
    # Second linear + Tanh. Hidden acts rounded to bf16 for the MXU, accumulate f32.
    y = jnp.dot(h.astype(w2_ref.dtype), w2_ref[...],
                preferred_element_type=jnp.float32)
    # f32 tanh (safe on v5e/v6e/v7x), bf16 store (output is in [-1, 1]).
    o_ref[...] = jnp.tanh(y + b2_ref[...]).astype(o_ref.dtype)


def prepare_params(w1, b1, w2, b2):
    """One-time parameter prep: lane-align K/N and cast weights to bf16.

    Hoisted out of the per-call forward so the padding/cast XLA ops (and their
    HBM traffic) are not paid on every generator invocation.  Biases stay f32
    and are added to the f32 accumulator inside the kernel.
    """
    K, H = w1.shape
    Hw, N = w2.shape
    assert Hw == H and H % 128 == 0
    K_pad = _round_up(K, 128)
    N_pad = _round_up(N, 128)

    w1_p = jnp.zeros((K_pad, H), jnp.bfloat16).at[:K, :].set(w1.astype(jnp.bfloat16))
    b1_p = jnp.asarray(b1, jnp.float32).reshape(1, H)
    w2_p = jnp.zeros((H, N_pad), jnp.bfloat16).at[:, :N].set(w2.astype(jnp.bfloat16))
    b2_p = jnp.zeros((1, N_pad), jnp.float32).at[:, :N].set(
        jnp.asarray(b2, jnp.float32).reshape(1, N))
    return w1_p, b1_p, w2_p, b2_p


def _pick_bm(B: int, block_m: int) -> int:
    """Batch tile: as big as possible (amortize grid-step overhead), but split
    into >= 2 grid steps when the batch allows so v7x's two TensorCores both
    get work on the 'parallel' axis (no effect on v5e/v6e)."""
    B8 = _round_up(B, 8)
    bm = min(block_m, B8)
    if B8 >= 16 and (B8 // bm) < 2:
        bm = _round_up((B8 + 1) // 2, 8)
    return bm


@functools.partial(jax.jit, static_argnames=("image_dim", "block_m"))
def generator_forward(x, w1_p, b1_p, w2_p, b2_p, *, image_dim: int,
                      block_m: int = 512):
    """y = tanh(relu(x @ w1 + b1) @ w2 + b2); weights already padded/bf16."""
    B, K = x.shape
    K_pad, H = w1_p.shape
    Hw, N_pad = w2_p.shape
    assert Hw == H and K <= K_pad and image_dim <= N_pad

    bm = _pick_bm(B, block_m)
    B_pad = _round_up(B, bm)
    grid = (B_pad // bm,)

    # Only the input is padded/cast per call.
    x_p = jnp.zeros((B_pad, K_pad), jnp.bfloat16).at[:B, :K].set(
        x.astype(jnp.bfloat16))

    vmem = pltpu.MemorySpace.VMEM
    const1 = pl.Buffered(1)   # constant-index blocks: no double-buffering

    bytes_accessed = (x_p.size * 2 + w1_p.size * 2 + w2_p.size * 2
                      + b1_p.size * 4 + b2_p.size * 4 + B_pad * N_pad * 2)
    cost = pl.CostEstimate(
        flops=2 * B_pad * (K_pad * H + H * N_pad),
        transcendentals=B_pad * N_pad,
        bytes_accessed=bytes_accessed,
    )

    out_padded = pl.pallas_call(
        generator_kernel,
        out_shape=jax.ShapeDtypeStruct((B_pad, N_pad), jnp.bfloat16),
        grid=grid,
        in_specs=[
            pl.BlockSpec((bm, K_pad), lambda i: (i, 0), memory_space=vmem),
            pl.BlockSpec((K_pad, H), lambda i: (0, 0), memory_space=vmem,
                         pipeline_mode=const1),
            pl.BlockSpec((1, H), lambda i: (0, 0), memory_space=vmem,
                         pipeline_mode=const1),
            pl.BlockSpec((H, N_pad), lambda i: (0, 0), memory_space=vmem,
                         pipeline_mode=const1),
            pl.BlockSpec((1, N_pad), lambda i: (0, 0), memory_space=vmem,
                         pipeline_mode=const1),
        ],
        out_specs=pl.BlockSpec((bm, N_pad), lambda i: (i, 0), memory_space=vmem),
        compiler_params=pltpu.CompilerParams(
            dimension_semantics=("parallel",)),
        cost_estimate=cost,
    )(x_p, w1_p, b1_p, w2_p, b2_p)

    # Strip the batch / lane padding (padded columns are tanh(0) = 0 anyway).
    return out_padded[:B, :image_dim]


def init_params(key, z_dim, hidden_dim, image_dim):
    """Deterministic PyTorch-style (Kaiming-uniform-ish) init, weights stored (in, out)."""
    k1, k2, k3, k4 = jax.random.split(key, 4)
    bound1 = 1.0 / jnp.sqrt(z_dim)
    bound2 = 1.0 / jnp.sqrt(hidden_dim)
    w1 = jax.random.uniform(k1, (z_dim, hidden_dim), jnp.float32, -bound1, bound1)
    b1 = jax.random.uniform(k2, (1, hidden_dim), jnp.float32, -bound1, bound1)
    w2 = jax.random.uniform(k3, (hidden_dim, image_dim), jnp.float32, -bound2, bound2)
    b2 = jax.random.uniform(k4, (1, image_dim), jnp.float32, -bound2, bound2)
    return w1, b1, w2, b2


if __name__ == "__main__":
    key = jax.random.PRNGKey(0)
    k_x, k_p = jax.random.split(key)

    x = jax.random.normal(k_x, (BATCH, Z_DIM), jnp.float32)
    w1, b1, w2, b2 = init_params(k_p, Z_DIM, HIDDEN_DIM, IMAGE_DIM)

    # One-time weight prep (cache these; re-do only when weights change).
    w1_p, b1_p, w2_p, b2_p = prepare_params(w1, b1, w2, b2)

    out = generator_forward(x, w1_p, b1_p, w2_p, b2_p, image_dim=IMAGE_DIM)
    out = jax.block_until_ready(out)

    # Reference in plain f32 JAX; tolerance covers bf16 weight/act/output rounding.
    ref = jnp.tanh(jnp.maximum(x @ w1 + b1, 0.0) @ w2 + b2)
    assert out.shape == (BATCH, IMAGE_DIM)
    assert out.dtype == jnp.bfloat16
    err = float(jnp.max(jnp.abs(out.astype(jnp.float32) - ref)))
    assert err < 3e-2, err

    print("KERNEL_OK")
</pallas_src>

<mosaic_0001>
module attributes {stable_mosaic.version = 11 : i64} {
  func.func @generator_kernel(%arg0: i32, %arg1: memref<8x128xbf16, #tpu.memory_space<vmem>>, %arg2: memref<128x256xbf16, #tpu.memory_space<vmem>>, %arg3: memref<1x256xf32, #tpu.memory_space<vmem>>, %arg4: memref<256x896xbf16, #tpu.memory_space<vmem>>, %arg5: memref<1x896xf32, #tpu.memory_space<vmem>>, %arg6: memref<8x896xbf16, #tpu.memory_space<vmem>>) attributes {dimension_semantics = [#tpu.dimension_semantics<parallel>], iteration_bounds = array<i64: 1>, scalar_prefetch = 0 : i64, scratch_operands = 0 : i64, tpu.core_type = #tpu.core_type<tc>, window_params = [{transform_indices = @transform_0, window_bounds = array<i64: 8, 128>}, {pipeline_mode = #tpu.pipeline_mode<synchronous>, transform_indices = @transform_1, window_bounds = array<i64: 128, 256>}, {pipeline_mode = #tpu.pipeline_mode<synchronous>, transform_indices = @transform_2, window_bounds = array<i64: 1, 256>}, {pipeline_mode = #tpu.pipeline_mode<synchronous>, transform_indices = @transform_3, window_bounds = array<i64: 256, 896>}, {pipeline_mode = #tpu.pipeline_mode<synchronous>, transform_indices = @transform_4, window_bounds = array<i64: 1, 896>}, {transform_indices = @transform_5, window_bounds = array<i64: 8, 896>}]} {
    %c0 = arith.constant 0 : index
    %c0_0 = arith.constant 0 : index
    %0 = vector.load %arg1[%c0, %c0_0] : memref<8x128xbf16, #tpu.memory_space<vmem>>, vector<8x128xbf16>
    %c0_1 = arith.constant 0 : index
    %c0_2 = arith.constant 0 : index
    %1 = vector.load %arg2[%c0_1, %c0_2] : memref<128x256xbf16, #tpu.memory_space<vmem>>, vector<128x256xbf16>
    %cst = arith.constant dense<0.000000e+00> : vector<8x256xf32>
    %2 = tpu.matmul %0, %1, %cst {dimension_numbers = #tpu.dot_dimension_numbers<[1], [0], [0], [1], [0, 0, 1, 1], [], []>} : vector<8x128xbf16>, vector<128x256xbf16>, vector<8x256xf32> -> vector<8x256xf32>
    %c0_3 = arith.constant 0 : index
    %c0_4 = arith.constant 0 : index
    %3 = vector.load %arg3[%c0_3, %c0_4] : memref<1x256xf32, #tpu.memory_space<vmem>>, vector<1x256xf32>
    %4 = vector.broadcast %3 : vector<1x256xf32> to vector<8x256xf32>
    %5 = arith.addf %2, %4 : vector<8x256xf32>
    %cst_5 = arith.constant 0.000000e+00 : f32
    %6 = vector.broadcast %cst_5 : f32 to vector<8x256xf32>
    %7 = arith.maximumf %5, %6 : vector<8x256xf32>
    %8 = arith.truncf %7 : vector<8x256xf32> to vector<8x256xbf16>
    %c0_6 = arith.constant 0 : index
    %c0_7 = arith.constant 0 : index
    %9 = vector.load %arg4[%c0_6, %c0_7] : memref<256x896xbf16, #tpu.memory_space<vmem>>, vector<256x896xbf16>
    %cst_8 = arith.constant dense<0.000000e+00> : vector<8x896xf32>
    %10 = tpu.matmul %8, %9, %cst_8 {dimension_numbers = #tpu.dot_dimension_numbers<[1], [0], [0], [1], [0, 0, 1, 1], [], []>} : vector<8x256xbf16>, vector<256x896xbf16>, vector<8x896xf32> -> vector<8x896xf32>
    %c0_9 = arith.constant 0 : index
    %c0_10 = arith.constant 0 : index
    %11 = vector.load %arg5[%c0_9, %c0_10] : memref<1x896xf32, #tpu.memory_space<vmem>>, vector<1x896xf32>
    %12 = vector.broadcast %11 : vector<1x896xf32> to vector<8x896xf32>
    %13 = arith.addf %10, %12 : vector<8x896xf32>
    %14 = math.tanh %13 : vector<8x896xf32>
    %15 = arith.truncf %14 : vector<8x896xf32> to vector<8x896xbf16>
    %c0_11 = arith.constant 0 : index
    %c0_12 = arith.constant 0 : index
    %16 = vector.load %arg6[%c0_11, %c0_12] : memref<8x896xbf16, #tpu.memory_space<vmem>>, vector<8x896xbf16>
    tpu.vector_store %arg6[%c0_11, %c0_12], %15 {strides = array<i32>} : memref<8x896xbf16, #tpu.memory_space<vmem>>, vector<8x896xbf16>,
    return
  }
  func.func @transform_0(%arg0: i32) -> (i32, i32) {
    %c0_i32 = arith.constant 0 : i32
    %c0_i32_0 = arith.constant 0 : i32
    return %arg0, %c0_i32 : i32, i32
  }
  func.func @transform_1(%arg0: i32) -> (i32, i32) {
    %c0_i32 = arith.constant 0 : i32
    %c0_i32_0 = arith.constant 0 : i32
    %c0_i32_1 = arith.constant 0 : i32
    return %c0_i32, %c0_i32_0 : i32, i32
  }
  func.func @transform_2(%arg0: i32) -> (i32, i32) {
    %c0_i32 = arith.constant 0 : i32
    %c0_i32_0 = arith.constant 0 : i32
    %c0_i32_1 = arith.constant 0 : i32
    return %c0_i32, %c0_i32_0 : i32, i32
  }
  func.func @transform_3(%arg0: i32) -> (i32, i32) {
    %c0_i32 = arith.constant 0 : i32
    %c0_i32_0 = arith.constant 0 : i32
    %c0_i32_1 = arith.constant 0 : i32
    return %c0_i32, %c0_i32_0 : i32, i32
  }
  func.func @transform_4(%arg0: i32) -> (i32, i32) {
    %c0_i32 = arith.constant 0 : i32
    %c0_i32_0 = arith.constant 0 : i32
    %c0_i32_1 = arith.constant 0 : i32
    return %c0_i32, %c0_i32_0 : i32, i32
  }
  func.func @transform_5(%arg0: i32) -> (i32, i32) {
    %c0_i32 = arith.constant 0 : i32
    %c0_i32_0 = arith.constant 0 : i32
    return %arg0, %c0_i32 : i32, i32
  }
}

</mosaic_0001>

<llo_original>
// kernel: generator_forward.1
$region0: #{generator_forward.1}
  #allocation0 [shape = 'u32[]', space=smem, size = 0x4, offset = 0x4, fixed_abs, tag = 'smem constant byte address 0x4 - core index']
  #allocation1 [shape = 'u32[72,128]{1,0:T(1,128)}', space=vmem, size = 0x9000, scoped, tag = 'internal scratch']
  %s0 = inlined_call_operand.vmem [shape: bf16[8,128], index: 0, kind: input, shape index: {}]
  %s1 = inlined_call_operand.hbm [shape: bf16[128,256], index: 1, kind: input, shape index: {}]
  %s2 = inlined_call_operand.vmem [shape: f32[1,256], index: 2, kind: input, shape index: {}]
  %s3 = inlined_call_operand.hbm [shape: bf16[256,896], index: 3, kind: input, shape index: {}]
  %s4 = inlined_call_operand.vmem [shape: f32[1,896], index: 4, kind: input, shape index: {}]
  %s5 = inlined_call_operand.hbm [shape: bf16[8,896], index: 5, kind: output, shape index: {}]
  %s6 = sld [smem:[#allocation0]]
  $region38: #{generator_forward.1} parent=0
    _
  %s8 = ssub.s32 1, %s6
  %s9 = scalar_select 0, %s8, %s6
  $region1: #{generator_forward.1} parent=0
    #allocation2 [shape = 'u8[65536]{0}', space=vmem, size = 0x10000, scoped, tag = 'input window, operand 1, single buffered']
    #allocation3 [shape = 's32[1]{0}', space=sflag, size = 0x4, scoped, tag = 'scoped memory for generator_forward.1']
    #allocation4 [shape = 's32[1]{0}', space=sflag, size = 0x4, scoped, tag = 'scoped memory for generator_forward.1']
    #allocation5 [shape = 'u8[458752]{0}', space=vmem, size = 0x70000, scoped, tag = 'input window, operand 3, single buffered']
    #allocation6 [shape = 's32[1]{0}', space=sflag, size = 0x4, scoped, tag = 'scoped memory for generator_forward.1']
    #allocation7 [shape = 'u8[14336]{0}', space=vmem, size = 0x3800, scoped, tag = 'output window, operand 0, single buffered']
    %10 = vsyncpa [#allocation3], 0
    %11 = vsyncpa [#allocation6], 0
    %12 = vsyncpa [#allocation4], 0
    // Predicated region
    $region2: #{generator_forward.1} parent=1 // pred_check
      _
    $region3: #{generator_forward.1} parent=1 // pred_check_branch
      %14 = sbr.rel (0) target = $region5
    $region4: #{generator_forward.1} parent=1 // pred_region
      _
    $region5: #{generator_forward.1} parent=1 // pred_fallthru
      _
    // Predicated region
    $region6: #{generator_forward.1} parent=1 // pred_check
      _
    $region7: #{generator_forward.1} parent=1 // pred_check_branch
      %16 = sbr.rel (0) target = $region9
    $region8: #{generator_forward.1} parent=1 // pred_region
      %18 = vsyncadd [#allocation3], 0
      %s19 = sshll.u32 %s1, 4
      %s20 = int_to_ptr.hbm [resolvable:$true] %s19
      %s21 = sshll.u32 [#allocation2], 4
      %s22 = int_to_ptr.vmem [resolvable:$true] %s21
      %27 = dma.hbm_to_vmem [thread:$0]  %s20, 2048, %s22, [#allocation3], 128, 128, 8
    $region9: #{generator_forward.1} parent=1 // pred_fallthru
      _
    // Predicated region
    $region10: #{generator_forward.1} parent=1 // pred_check
      _
    $region11: #{generator_forward.1} parent=1 // pred_check_branch
      %29 = sbr.rel (0) target = $region13
    $region12: #{generator_forward.1} parent=1 // pred_region
      _
    $region13: #{generator_forward.1} parent=1 // pred_fallthru
      _
    // Predicated region
    $region14: #{generator_forward.1} parent=1 // pred_check
      _
    $region15: #{generator_forward.1} parent=1 // pred_check_branch
      %31 = sbr.rel (0) target = $region17
    $region16: #{generator_forward.1} parent=1 // pred_region
      %33 = vsyncadd [#allocation6], 0
      %s34 = sshll.u32 %s3, 4
      %s35 = int_to_ptr.hbm [resolvable:$true] %s34
      %s36 = sshll.u32 [#allocation5], 4
      %s37 = int_to_ptr.vmem [resolvable:$true] %s36
      %42 = dma.hbm_to_vmem [thread:$0]  %s35, 14336, %s37, [#allocation6], 448, 448, 28
    $region17: #{generator_forward.1} parent=1 // pred_fallthru
      _
    // Predicated region
    $region18: #{generator_forward.1} parent=1 // pred_check
      _
    $region19: #{generator_forward.1} parent=1 // pred_check_branch
      %44 = sbr.rel (0) target = $region21
    $region20: #{generator_forward.1} parent=1 // pred_region
      _
    $region21: #{generator_forward.1} parent=1 // pred_fallthru
      _
    // Predicated region
    $region22: #{generator_forward.1} parent=1 // pred_check
      _
    $region23: #{generator_forward.1} parent=1 // pred_check_branch
      %46 = sbr.rel (0) target = $region25
    $region24: #{generator_forward.1} parent=1 // pred_region
      %48 = dma.done [#allocation3], 2048
    $region25: #{generator_forward.1} parent=1 // pred_fallthru
      _
    // Predicated region
    $region26: #{generator_forward.1} parent=1 // pred_check
      _
    $region27: #{generator_forward.1} parent=1 // pred_check_branch
      %50 = sbr.rel (0) target = $region29
    $region28: #{generator_forward.1} parent=1 // pred_region
      %52 = dma.done [#allocation6], 14336
    $region29: #{generator_forward.1} parent=1 // pred_fallthru
      _
    %v53 = vld [vmem:[%s0] sm:$0xf]
    %v54 = vld [vmem:[#allocation2] sm:$0xff]
    %v55 = vld [vmem:[#allocation2 + $0x8] sm:$0xff]
    %v56 = vld [vmem:[#allocation2 + $0x10] sm:$0xff]
    %v57 = vld [vmem:[#allocation2 + $0x18] sm:$0xff]
    %v58 = vld [vmem:[#allocation2 + $0x20] sm:$0xff]
    %v59 = vld [vmem:[#allocation2 + $0x28] sm:$0xff]
    %v60 = vld [vmem:[#allocation2 + $0x30] sm:$0xff]
    %v61 = vld [vmem:[#allocation2 + $0x38] sm:$0xff]
    %v62 = vld [vmem:[#allocation2 + $0x40] sm:$0xff]
    %v63 = vld [vmem:[#allocation2 + $0x48] sm:$0xff]
    %v64 = vld [vmem:[#allocation2 + $0x50] sm:$0xff]
    %v65 = vld [vmem:[#allocation2 + $0x58] sm:$0xff]
    %v66 = vld [vmem:[#allocation2 + $0x60] sm:$0xff]
    %v67 = vld [vmem:[#allocation2 + $0x68] sm:$0xff]
    %v68 = vld [vmem:[#allocation2 + $0x70] sm:$0xff]
    %v69 = vld [vmem:[#allocation2 + $0x78] sm:$0xff]
    %v70 = vld [vmem:[%s2] sm:$0x3]
    %v72 = vperm.slane %v70, 0
    %v73 = vperm.slane %v70, 1
    %v92 = vunpack.c.l.b16 %v54
    %v93 = vunpack.c.h.b16 %v54
    %v94 = vunpack.c.l.b16 %v55
    %v95 = vunpack.c.h.b16 %v55
    %v96 = vunpack.c.l.b16 %v56
    %v97 = vunpack.c.h.b16 %v56
    %v98 = vunpack.c.l.b16 %v57
    %v99 = vunpack.c.h.b16 %v57
    %v100 = vunpack.c.l.b16 %v58
    %v101 = vunpack.c.h.b16 %v58
    %v102 = vunpack.c.l.b16 %v59
    %v103 = vunpack.c.h.b16 %v59
    %v104 = vunpack.c.l.b16 %v60
    %v105 = vunpack.c.h.b16 %v60
    %v106 = vunpack.c.l.b16 %v61
    %v107 = vunpack.c.h.b16 %v61
    %v108 = vunpack.c.l.b16 %v62
    %v109 = vunpack.c.h.b16 %v62
    %v110 = vunpack.c.l.b16 %v63
    %v111 = vunpack.c.h.b16 %v63
    %v112 = vunpack.c.l.b16 %v64
    %v113 = vunpack.c.h.b16 %v64
    %v114 = vunpack.c.l.b16 %v65
    %v115 = vunpack.c.h.b16 %v65
    %v116 = vunpack.c.l.b16 %v66
    %v117 = vunpack.c.h.b16 %v66
    %v118 = vunpack.c.l.b16 %v67
    %v119 = vunpack.c.h.b16 %v67
    %v120 = vunpack.c.l.b16 %v68
    %v121 = vunpack.c.h.b16 %v68
    %v122 = vunpack.c.l.b16 %v69
    %v123 = vunpack.c.h.b16 %v69
    %v124 = vpack.c.b16 %v94, %v92
    %v125 = vpack.c.b16 %v95, %v93
    %v126 = vpack.c.b16 %v98, %v96
    %v127 = vpack.c.b16 %v99, %v97
    %v128 = vpack.c.b16 %v102, %v100
    %v129 = vpack.c.b16 %v103, %v101
    %v130 = vpack.c.b16 %v106, %v104
    %v131 = vpack.c.b16 %v107, %v105
    %v132 = vpack.c.b16 %v110, %v108
    %v133 = vpack.c.b16 %v111, %v109
    %v134 = vpack.c.b16 %v114, %v112
    %v135 = vpack.c.b16 %v115, %v113
    %v136 = vpack.c.b16 %v118, %v116
    %v137 = vpack.c.b16 %v119, %v117
    %v138 = vpack.c.b16 %v122, %v120
    %v139 = vpack.c.b16 %v123, %v121
    %156 = vmatpush.bf16.msra.mxu0 %v138
    %157 = vmatpush.bf16.msra.mxu0 %v136
    %158 = vmatpush.bf16.msra.mxu0 %v134
    %159 = vmatpush.bf16.msra.mxu0 %v132
    %160 = vmatpush.bf16.msra.mxu0 %v130
    %161 = vmatpush.bf16.msra.mxu0 %v128
    %162 = vmatpush.bf16.msra.mxu0 %v126
    %163 = vmatpush.bf16.msra.mxu0 %v124
    %164 = vmatmul.bf16.gmra.mxu0 %v53
    %v165 = vpop.f32.mrf.mxu0
    %v166 = vadd.f32 %v72, %v165
    %v167 = vpop.f32.mrf.mxu0
    %168 = vdwg.mxu0
    %169 = vmatpush.bf16.msra.mxu0 %v139
    %170 = vmatpush.bf16.msra.mxu0 %v137
    %171 = vmatpush.bf16.msra.mxu0 %v135
    %172 = vmatpush.bf16.msra.mxu0 %v133
    %173 = vmatpush.bf16.msra.mxu0 %v131
    %174 = vmatpush.bf16.msra.mxu0 %v129
    %175 = vmatpush.bf16.msra.mxu0 %v127
    %176 = vmatpush.bf16.msra.mxu0 %v125
    %177 = vmatmul.bf16.gmra.mxu0 %v53
    %v178 = vpop.f32.mrf.mxu0
    %v179 = vadd.f32 %v73, %v178
    %v180 = vpop.f32.mrf.mxu0
    %181 = vdwg.mxu0
    %v182 = vmax.f32 %v166, 0.0
    %v183 = vmax.f32 %v179, 0.0
    %v184 = vpack.c.bf16 %v182, %v182
    %v185 = vpack.c.bf16 %v183, %v183
    %v186 = vld [vmem:[#allocation5] sm:$0xff]
    %v187 = vld [vmem:[#allocation5 + $0x8] sm:$0xff]
    %v188 = vld [vmem:[#allocation5 + $0x10] sm:$0xff]
    %v189 = vld [vmem:[#allocation5 + $0x18] sm:$0xf]
    %v190 = vld [vmem:[#allocation5 + $0x1c] sm:$0xff]
    %v191 = vld [vmem:[#allocation5 + $0x24] sm:$0xff]
    %v192 = vld [vmem:[#allocation5 + $0x2c] sm:$0xff]
    %v193 = vld [vmem:[#allocation5 + $0x34] sm:$0xf]
    %v194 = vld [vmem:[#allocation5 + $0x38] sm:$0xff]
    %v195 = vld [vmem:[#allocation5 + $0x40] sm:$0xff]
    %v196 = vld [vmem:[#allocation5 + $0x48] sm:$0xff]
    %v197 = vld [vmem:[#allocation5 + $0x50] sm:$0xf]
    %v198 = vld [vmem:[#allocation5 + $0x54] sm:$0xff]
    %v199 = vld [vmem:[#allocation5 + $0x5c] sm:$0xff]
    %v200 = vld [vmem:[#allocation5 + $0x64] sm:$0xff]
    %v201 = vld [vmem:[#allocation5 + $0x6c] sm:$0xf]
    %v202 = vld [vmem:[#allocation5 + $0x70] sm:$0xff]
    %v203 = vld [vmem:[#allocation5 + $0x78] sm:$0xff]
    %v204 = vld [vmem:[#allocation5 + $0x80] sm:$0xff]
    %v205 = vld [vmem:[#allocation5 + $0x88] sm:$0xf]
    %v206 = vld [vmem:[#allocation5 + $0x8c] sm:$0xff]
    %v207 = vld [vmem:[#allocation5 + $0x94] sm:$0xff]
    %v208 = vld [vmem:[#allocation5 + $0x9c] sm:$0xff]
    %v209 = vld [vmem:[#allocation5 + $0xa4] sm:$0xf]
    %v210 = vld [vmem:[#allocation5 + $0xa8] sm:$0xff]
    %v211 = vld [vmem:[#allocation5 + $0xb0] sm:$0xff]
    %v212 = vld [vmem:[#allocation5 + $0xb8] sm:$0xff]
    %v213 = vld [vmem:[#allocation5 + $0xc0] sm:$0xf]
    %v214 = vld [vmem:[#allocation5 + $0xc4] sm:$0xff]
    %v215 = vld [vmem:[#allocation5 + $0xcc] sm:$0xff]
    %v216 = vld [vmem:[#allocation5 + $0xd4] sm:$0xff]
    %v217 = vld [vmem:[#allocation5 + $0xdc] sm:$0xf]
    %v218 = vld [vmem:[#allocation5 + $0xe0] sm:$0xff]
    %v219 = vld [vmem:[#allocation5 + $0xe8] sm:$0xff]
    %v220 = vld [vmem:[#allocation5 + $0xf0] sm:$0xff]
    %v221 = vld [vmem:[#allocation5 + $0xf8] sm:$0xf]
    %v222 = vld [vmem:[#allocation5 + $0xfc] sm:$0xff]
    %v223 = vld [vmem:[#allocation5 + $0x104] sm:$0xff]
    %v224 = vld [vmem:[#allocation5 + $0x10c] sm:$0xff]
    %v225 = vld [vmem:[#allocation5 + $0x114] sm:$0xf]
    %v226 = vld [vmem:[#allocation5 + $0x118] sm:$0xff]
    %v227 = vld [vmem:[#allocation5 + $0x120] sm:$0xff]
    %v228 = vld [vmem:[#allocation5 + $0x128] sm:$0xff]
    %v229 = vld [vmem:[#allocation5 + $0x130] sm:$0xf]
    %v230 = vld [vmem:[#allocation5 + $0x134] sm:$0xff]
    %v231 = vld [vmem:[#allocation5 + $0x13c] sm:$0xff]
    %v232 = vld [vmem:[#allocation5 + $0x144] sm:$0xff]
    %v233 = vld [vmem:[#allocation5 + $0x14c] sm:$0xf]
    %v234 = vld [vmem:[#allocation5 + $0x150] sm:$0xff]
    %v235 = vld [vmem:[#allocation5 + $0x158] sm:$0xff]
    %v236 = vld [vmem:[#allocation5 + $0x160] sm:$0xff]
    %v237 = vld [vmem:[#allocation5 + $0x168] sm:$0xf]
    %v238 = vld [vmem:[#allocation5 + $0x16c] sm:$0xff]
    %v239 = vld [vmem:[#allocation5 + $0x174] sm:$0xff]
    %v240 = vld [vmem:[#allocation5 + $0x17c] sm:$0xff]
    %v241 = vld [vmem:[#allocation5 + $0x184] sm:$0xf]
    %v242 = vld [vmem:[#allocation5 + $0x188] sm:$0xff]
    %v243 = vld [vmem:[#allocation5 + $0x190] sm:$0xff]
    %v244 = vld [vmem:[#allocation5 + $0x198] sm:$0xff]
    %v245 = vld [vmem:[#allocation5 + $0x1a0] sm:$0xf]
    %v246 = vld [vmem:[#allocation5 + $0x1a4] sm:$0xff]
    %v247 = vld [vmem:[#allocation5 + $0x1ac] sm:$0xff]
    %v248 = vld [vmem:[#allocation5 + $0x1b4] sm:$0xff]
    %v249 = vld [vmem:[#allocation5 + $0x1bc] sm:$0xf]
    %v250 = vld [vmem:[#allocation5 + $0x1c0] sm:$0xff]
    %v251 = vld [vmem:[#allocation5 + $0x1c8] sm:$0xff]
    %v252 = vld [vmem:[#allocation5 + $0x1d0] sm:$0xff]
    %v253 = vld [vmem:[#allocation5 + $0x1d8] sm:$0xf]
    %v254 = vld [vmem:[#allocation5 + $0x1dc] sm:$0xff]
    %v255 = vld [vmem:[#allocation5 + $0x1e4] sm:$0xff]
    %v256 = vld [vmem:[#allocation5 + $0x1ec] sm:$0xff]
    %v257 = vld [vmem:[#allocation5 + $0x1f4] sm:$0xf]
    %v258 = vld [vmem:[#allocation5 + $0x1f8] sm:$0xff]
    %v259 = vld [vmem:[#allocation5 + $0x200] sm:$0xff]
    %v260 = vld [vmem:[#allocation5 + $0x208] sm:$0xff]
    %v261 = vld [vmem:[#allocation5 + $0x210] sm:$0xf]
    %v262 = vld [vmem:[#allocation5 + $0x214] sm:$0xff]
    %v263 = vld [vmem:[#allocation5 + $0x21c] sm:$0xff]
    %v264 = vld [vmem:[#allocation5 + $0x224] sm:$0xff]
    %v265 = vld [vmem:[#allocation5 + $0x22c] sm:$0xf]
    %v266 = vld [vmem:[#allocation5 + $0x230] sm:$0xff]
    %v267 = vld [vmem:[#allocation5 + $0x238] sm:$0xff]
    %v268 = vld [vmem:[#allocation5 + $0x240] sm:$0xff]
    %v269 = vld [vmem:[#allocation5 + $0x248] sm:$0xf]
    %v270 = vld [vmem:[#allocation5 + $0x24c] sm:$0xff]
    %v271 = vld [vmem:[#allocation5 + $0x254] sm:$0xff]
    %v272 = vld [vmem:[#allocation5 + $0x25c] sm:$0xff]
    %v273 = vld [vmem:[#allocation5 + $0x264] sm:$0xf]
    %v274 = vld [vmem:[#allocation5 + $0x268] sm:$0xff]
    %v275 = vld [vmem:[#allocation5 + $0x270] sm:$0xff]
    %v276 = vld [vmem:[#allocation5 + $0x278] sm:$0xff]
    %v277 = vld [vmem:[#allocation5 + $0x280] sm:$0xf]
    %v278 = vld [vmem:[#allocation5 + $0x284] sm:$0xff]
    %v279 = vld [vmem:[#allocation5 + $0x28c] sm:$0xff]
    %v280 = vld [vmem:[#allocation5 + $0x294] sm:$0xff]
    %v281 = vld [vmem:[#allocation5 + $0x29c] sm:$0xf]
    %v282 = vld [vmem:[#allocation5 + $0x2a0] sm:$0xff]
    %v283 = vld [vmem:[#allocation5 + $0x2a8] sm:$0xff]
    %v284 = vld [vmem:[#allocation5 + $0x2b0] sm:$0xff]
    %v285 = vld [vmem:[#allocation5 + $0x2b8] sm:$0xf]
    %v286 = vld [vmem:[#allocation5 + $0x2bc] sm:$0xff]
    %v287 = vld [vmem:[#allocation5 + $0x2c4] sm:$0xff]
    %v288 = vld [vmem:[#allocation5 + $0x2cc] sm:$0xff]
    %v289 = vld [vmem:[#allocation5 + $0x2d4] sm:$0xf]
    %v290 = vld [vmem:[#allocation5 + $0x2d8] sm:$0xff]
    %v291 = vld [vmem:[#allocation5 + $0x2e0] sm:$0xff]
    %v292 = vld [vmem:[#allocation5 + $0x2e8] sm:$0xff]
    %v293 = vld [vmem:[#allocation5 + $0x2f0] sm:$0xf]
    %v294 = vld [vmem:[#allocation5 + $0x2f4] sm:$0xff]
    %v295 = vld [vmem:[#allocation5 + $0x2fc] sm:$0xff]
    %v296 = vld [vmem:[#allocation5 + $0x304] sm:$0xff]
    %v297 = vld [vmem:[#allocation5 + $0x30c] sm:$0xf]
    %v298 = vld [vmem:[#allocation5 + $0x310] sm:$0xff]
    %v299 = vld [vmem:[#allocation5 + $0x318] sm:$0xff]
    %v300 = vld [vmem:[#allocation5 + $0x320] sm:$0xff]
    %v301 = vld [vmem:[#allocation5 + $0x328] sm:$0xf]
    %v302 = vld [vmem:[#allocation5 + $0x32c] sm:$0xff]
    %v303 = vld [vmem:[#allocation5 + $0x334] sm:$0xff]
    %v304 = vld [vmem:[#allocation5 + $0x33c] sm:$0xff]
    %v305 = vld [vmem:[#allocation5 + $0x344] sm:$0xf]
    %v306 = vld [vmem:[#allocation5 + $0x348] sm:$0xff]
    %v307 = vld [vmem:[#allocation5 + $0x350] sm:$0xff]
    %v308 = vld [vmem:[#allocation5 + $0x358] sm:$0xff]
    %v309 = vld [vmem:[#allocation5 + $0x360] sm:$0xf]
    %v310 = vld [vmem:[#allocation5 + $0x364] sm:$0xff]
    %v311 = vld [vmem:[#allocation5 + $0x36c] sm:$0xff]
    %v312 = vld [vmem:[#allocation5 + $0x374] sm:$0xff]
    %v313 = vld [vmem:[#allocation5 + $0x37c] sm:$0xf]
    %v314 = vld [vmem:[%s4] sm:$0xff]
    %v316 = vperm.slane %v314, 0
    %v317 = vperm.slane %v314, 1
    %v318 = vperm.slane %v314, 2
    %v319 = vperm.slane %v314, 3
    %v320 = vperm.slane %v314, 4
    %v321 = vperm.slane %v314, 5
    %v322 = vperm.slane %v314, 6
    %v458 = vunpack.c.l.b16 %v186
    %v459 = vunpack.c.h.b16 %v186
    %v460 = vunpack.c.l.b16 %v187
    %v461 = vunpack.c.h.b16 %v187
    %v462 = vunpack.c.l.b16 %v188
    %v463 = vunpack.c.h.b16 %v188
    %v464 = vunpack.c.l.b16 %v189
    %v465 = vunpack.c.l.b16 %v190
    %v466 = vunpack.c.h.b16 %v190
    %v467 = vunpack.c.l.b16 %v191
    %v468 = vunpack.c.h.b16 %v191
    %v469 = vunpack.c.l.b16 %v192
    %v470 = vunpack.c.h.b16 %v192
    %v471 = vunpack.c.l.b16 %v193
    %v472 = vunpack.c.l.b16 %v194
    %v473 = vunpack.c.h.b16 %v194
    %v474 = vunpack.c.l.b16 %v195
    %v475 = vunpack.c.h.b16 %v195
    %v476 = vunpack.c.l.b16 %v196
    %v477 = vunpack.c.h.b16 %v196
    %v478 = vunpack.c.l.b16 %v197
    %v479 = vunpack.c.l.b16 %v198
    %v480 = vunpack.c.h.b16 %v198
    %v481 = vunpack.c.l.b16 %v199
    %v482 = vunpack.c.h.b16 %v199
    %v483 = vunpack.c.l.b16 %v200
    %v484 = vunpack.c.h.b16 %v200
    %v485 = vunpack.c.l.b16 %v201
    %v486 = vunpack.c.l.b16 %v202
    %v487 = vunpack.c.h.b16 %v202
    %v488 = vunpack.c.l.b16 %v203
    %v489 = vunpack.c.h.b16 %v203
    %v490 = vunpack.c.l.b16 %v204
    %v491 = vunpack.c.h.b16 %v204
    %v492 = vunpack.c.l.b16 %v205
    %v493 = vunpack.c.l.b16 %v206
    %v494 = vunpack.c.h.b16 %v206
    %v495 = vunpack.c.l.b16 %v207
    %v496 = vunpack.c.h.b16 %v207
    %v497 = vunpack.c.l.b16 %v208
    %v498 = vunpack.c.h.b16 %v208
    %v499 = vunpack.c.l.b16 %v209
    %v500 = vunpack.c.l.b16 %v210
    %v501 = vunpack.c.h.b16 %v210
    %v502 = vunpack.c.l.b16 %v211
    %v503 = vunpack.c.h.b16 %v211
    %v504 = vunpack.c.l.b16 %v212
    %v505 = vunpack.c.h.b16 %v212
    %v506 = vunpack.c.l.b16 %v213
    %v507 = vunpack.c.l.b16 %v214
    %v508 = vunpack.c.h.b16 %v214
    %v509 = vunpack.c.l.b16 %v215
    %v510 = vunpack.c.h.b16 %v215
    %v511 = vunpack.c.l.b16 %v216
    %v512 = vunpack.c.h.b16 %v216
    %v513 = vunpack.c.l.b16 %v217
    %v514 = vunpack.c.l.b16 %v218
    %v515 = vunpack.c.h.b16 %v218
    %v516 = vunpack.c.l.b16 %v219
    %v517 = vunpack.c.h.b16 %v219
    %v518 = vunpack.c.l.b16 %v220
    %v519 = vunpack.c.h.b16 %v220
    %v520 = vunpack.c.l.b16 %v221
    %v521 = vunpack.c.l.b16 %v222
    %v522 = vunpack.c.h.b16 %v222
    %v523 = vunpack.c.l.b16 %v223
    %v524 = vunpack.c.h.b16 %v223
    %v525 = vunpack.c.l.b16 %v224
    %v526 = vunpack.c.h.b16 %v224
    %v527 = vunpack.c.l.b16 %v225
    %v528 = vunpack.c.l.b16 %v226
    %v529 = vunpack.c.h.b16 %v226
    %v530 = vunpack.c.l.b16 %v227
    %v531 = vunpack.c.h.b16 %v227
    %v532 = vunpack.c.l.b16 %v228
    %v533 = vunpack.c.h.b16 %v228
    %v534 = vunpack.c.l.b16 %v229
    %v535 = vunpack.c.l.b16 %v230
    %v536 = vunpack.c.h.b16 %v230
    %v537 = vunpack.c.l.b16 %v231
    %v538 = vunpack.c.h.b16 %v231
    %v539 = vunpack.c.l.b16 %v232
    %v540 = vunpack.c.h.b16 %v232
    %v541 = vunpack.c.l.b16 %v233
    %v542 = vunpack.c.l.b16 %v234
    %v543 = vunpack.c.h.b16 %v234
    %v544 = vunpack.c.l.b16 %v235
    %v545 = vunpack.c.h.b16 %v235
    %v546 = vunpack.c.l.b16 %v236
    %v547 = vunpack.c.h.b16 %v236
    %v548 = vunpack.c.l.b16 %v237
    %v549 = vunpack.c.l.b16 %v238
    %v550 = vunpack.c.h.b16 %v238
    %v551 = vunpack.c.l.b16 %v239
    %v552 = vunpack.c.h.b16 %v239
    %v553 = vunpack.c.l.b16 %v240
    %v554 = vunpack.c.h.b16 %v240
    %v555 = vunpack.c.l.b16 %v241
    %v556 = vunpack.c.l.b16 %v242
    %v557 = vunpack.c.h.b16 %v242
    %v558 = vunpack.c.l.b16 %v243
    %v559 = vunpack.c.h.b16 %v243
    %v560 = vunpack.c.l.b16 %v244
    %v561 = vunpack.c.h.b16 %v244
    %v562 = vunpack.c.l.b16 %v245
    %v563 = vunpack.c.l.b16 %v246
    %v564 = vunpack.c.h.b16 %v246
    %v565 = vunpack.c.l.b16 %v247
    %v566 = vunpack.c.h.b16 %v247
    %v567 = vunpack.c.l.b16 %v248
    %v568 = vunpack.c.h.b16 %v248
    %v569 = vunpack.c.l.b16 %v249
    %v570 = vunpack.c.l.b16 %v250
    %v571 = vunpack.c.h.b16 %v250
    %v572 = vunpack.c.l.b16 %v251
    %v573 = vunpack.c.h.b16 %v251
    %v574 = vunpack.c.l.b16 %v252
    %v575 = vunpack.c.h.b16 %v252
    %v576 = vunpack.c.l.b16 %v253
    %v577 = vunpack.c.l.b16 %v254
    %v578 = vunpack.c.h.b16 %v254
    %v579 = vunpack.c.l.b16 %v255
    %v580 = vunpack.c.h.b16 %v255
    %v581 = vunpack.c.l.b16 %v256
    %v582 = vunpack.c.h.b16 %v256
    %v583 = vunpack.c.l.b16 %v257
    %v584 = vunpack.c.l.b16 %v258
    %v585 = vunpack.c.h.b16 %v258
    %v586 = vunpack.c.l.b16 %v259
    %v587 = vunpack.c.h.b16 %v259
    %v588 = vunpack.c.l.b16 %v260
    %v589 = vunpack.c.h.b16 %v260
    %v590 = vunpack.c.l.b16 %v261
    %v591 = vunpack.c.l.b16 %v262
    %v592 = vunpack.c.h.b16 %v262
    %v593 = vunpack.c.l.b16 %v263
    %v594 = vunpack.c.h.b16 %v263
    %v595 = vunpack.c.l.b16 %v264
    %v596 = vunpack.c.h.b16 %v264
    %v597 = vunpack.c.l.b16 %v265
    %v598 = vunpack.c.l.b16 %v266
    %v599 = vunpack.c.h.b16 %v266
    %v600 = vunpack.c.l.b16 %v267
    %v601 = vunpack.c.h.b16 %v267
    %v602 = vunpack.c.l.b16 %v268
    %v603 = vunpack.c.h.b16 %v268
    %v604 = vunpack.c.l.b16 %v269
    %v605 = vunpack.c.l.b16 %v270
    %v606 = vunpack.c.h.b16 %v270
    %v607 = vunpack.c.l.b16 %v271
    %v608 = vunpack.c.h.b16 %v271
    %v609 = vunpack.c.l.b16 %v272
    %v610 = vunpack.c.h.b16 %v272
    %v611 = vunpack.c.l.b16 %v273
    %v612 = vunpack.c.l.b16 %v274
    %v613 = vunpack.c.h.b16 %v274
    %v614 = vunpack.c.l.b16 %v275
    %v615 = vunpack.c.h.b16 %v275
    %v616 = vunpack.c.l.b16 %v276
    %v617 = vunpack.c.h.b16 %v276
    %v618 = vunpack.c.l.b16 %v277
    %v619 = vunpack.c.l.b16 %v278
    %v620 = vunpack.c.h.b16 %v278
    %v621 = vunpack.c.l.b16 %v279
    %v622 = vunpack.c.h.b16 %v279
    %v623 = vunpack.c.l.b16 %v280
    %v624 = vunpack.c.h.b16 %v280
    %v625 = vunpack.c.l.b16 %v281
    %v626 = vunpack.c.l.b16 %v282
    %v627 = vunpack.c.h.b16 %v282
    %v628 = vunpack.c.l.b16 %v283
    %v629 = vunpack.c.h.b16 %v283
    %v630 = vunpack.c.l.b16 %v284
    %v631 = vunpack.c.h.b16 %v284
    %v632 = vunpack.c.l.b16 %v285
    %v633 = vunpack.c.l.b16 %v286
    %v634 = vunpack.c.h.b16 %v286
    %v635 = vunpack.c.l.b16 %v287
    %v636 = vunpack.c.h.b16 %v287
    %v637 = vunpack.c.l.b16 %v288
    %v638 = vunpack.c.h.b16 %v288
    %v639 = vunpack.c.l.b16 %v289
    %v640 = vunpack.c.l.b16 %v290
    %v641 = vunpack.c.h.b16 %v290
    %v642 = vunpack.c.l.b16 %v291
    %v643 = vunpack.c.h.b16 %v291
    %v644 = vunpack.c.l.b16 %v292
    %v645 = vunpack.c.h.b16 %v292
    %v646 = vunpack.c.l.b16 %v293
    %v647 = vunpack.c.l.b16 %v294
    %v648 = vunpack.c.h.b16 %v294
    %v649 = vunpack.c.l.b16 %v295
    %v650 = vunpack.c.h.b16 %v295
    %v651 = vunpack.c.l.b16 %v296
    %v652 = vunpack.c.h.b16 %v296
    %v653 = vunpack.c.l.b16 %v297
    %v654 = vunpack.c.l.b16 %v298
    %v655 = vunpack.c.h.b16 %v298
    %v656 = vunpack.c.l.b16 %v299
    %v657 = vunpack.c.h.b16 %v299
    %v658 = vunpack.c.l.b16 %v300
    %v659 = vunpack.c.h.b16 %v300
    %v660 = vunpack.c.l.b16 %v301
    %v661 = vunpack.c.l.b16 %v302
    %v662 = vunpack.c.h.b16 %v302
    %v663 = vunpack.c.l.b16 %v303
    %v664 = vunpack.c.h.b16 %v303
    %v665 = vunpack.c.l.b16 %v304
    %v666 = vunpack.c.h.b16 %v304
    %v667 = vunpack.c.l.b16 %v305
    %v668 = vunpack.c.l.b16 %v306
    %v669 = vunpack.c.h.b16 %v306
    %v670 = vunpack.c.l.b16 %v307
    %v671 = vunpack.c.h.b16 %v307
    %v672 = vunpack.c.l.b16 %v308
    %v673 = vunpack.c.h.b16 %v308
    %v674 = vunpack.c.l.b16 %v309
    %v675 = vunpack.c.l.b16 %v310
    %v676 = vunpack.c.h.b16 %v310
    %v677 = vunpack.c.l.b16 %v311
    %v678 = vunpack.c.h.b16 %v311
    %v679 = vunpack.c.l.b16 %v312
    %v680 = vunpack.c.h.b16 %v312
    %v681 = vunpack.c.l.b16 %v313
    %v682 = vpack.c.b16 %v465, %v458
    %v683 = vpack.c.b16 %v466, %v459
    %v684 = vpack.c.b16 %v467, %v460
    %v685 = vpack.c.b16 %v468, %v461
    %v686 = vpack.c.b16 %v469, %v462
    %v687 = vpack.c.b16 %v470, %v463
    %v688 = vpack.c.b16 %v471, %v464
    %v689 = vpack.c.b16 %v479, %v472
    %v690 = vpack.c.b16 %v480, %v473
    %v691 = vpack.c.b16 %v481, %v474
    %v692 = vpack.c.b16 %v482, %v475
    %v693 = vpack.c.b16 %v483, %v476
    %v694 = vpack.c.b16 %v484, %v477
    %v695 = vpack.c.b16 %v485, %v478
    %v696 = vpack.c.b16 %v493, %v486
    %v697 = vpack.c.b16 %v494, %v487
    %v698 = vpack.c.b16 %v495, %v488
    %v699 = vpack.c.b16 %v496, %v489
    %v700 = vpack.c.b16 %v497, %v490
    %v701 = vpack.c.b16 %v498, %v491
    %v702 = vpack.c.b16 %v499, %v492
    %v703 = vpack.c.b16 %v507, %v500
    %v704 = vpack.c.b16 %v508, %v501
    %v705 = vpack.c.b16 %v509, %v502
    %v706 = vpack.c.b16 %v510, %v503
    %v707 = vpack.c.b16 %v511, %v504
    %v708 = vpack.c.b16 %v512, %v505
    %v709 = vpack.c.b16 %v513, %v506
    %v710 = vpack.c.b16 %v521, %v514
    %v711 = vpack.c.b16 %v522, %v515
    %v712 = vpack.c.b16 %v523, %v516
    %v713 = vpack.c.b16 %v524, %v517
    %v714 = vpack.c.b16 %v525, %v518
    %v715 = vpack.c.b16 %v526, %v519
    %v716 = vpack.c.b16 %v527, %v520
    %v717 = vpack.c.b16 %v535, %v528
    %v718 = vpack.c.b16 %v536, %v529
    %v719 = vpack.c.b16 %v537, %v530
    %v720 = vpack.c.b16 %v538, %v531
    %v721 = vpack.c.b16 %v539, %v532
    %v722 = vpack.c.b16 %v540, %v533
    %v723 = vpack.c.b16 %v541, %v534
    %v724 = vpack.c.b16 %v549, %v542
    %v725 = vpack.c.b16 %v550, %v543
    %v726 = vpack.c.b16 %v551, %v544
    %v727 = vpack.c.b16 %v552, %v545
    %v728 = vpack.c.b16 %v553, %v546
    %v729 = vpack.c.b16 %v554, %v547
    %v730 = vpack.c.b16 %v555, %v548
    %v731 = vpack.c.b16 %v563, %v556
    %v732 = vpack.c.b16 %v564, %v557
    %v733 = vpack.c.b16 %v565, %v558
    %v734 = vpack.c.b16 %v566, %v559
    %v735 = vpack.c.b16 %v567, %v560
    %v736 = vpack.c.b16 %v568, %v561
    %v737 = vpack.c.b16 %v569, %v562
    %v738 = vpack.c.b16 %v577, %v570
    %v739 = vpack.c.b16 %v578, %v571
    %v740 = vpack.c.b16 %v579, %v572
    %v741 = vpack.c.b16 %v580, %v573
    %v742 = vpack.c.b16 %v581, %v574
    %v743 = vpack.c.b16 %v582, %v575
    %v744 = vpack.c.b16 %v583, %v576
    %v745 = vpack.c.b16 %v591, %v584
    %v746 = vpack.c.b16 %v592, %v585
    %v747 = vpack.c.b16 %v593, %v586
    %v748 = vpack.c.b16 %v594, %v587
    %v749 = vpack.c.b16 %v595, %v588
    %v750 = vpack.c.b16 %v596, %v589
    %v751 = vpack.c.b16 %v597, %v590
    %v752 = vpack.c.b16 %v605, %v598
    %v753 = vpack.c.b16 %v606, %v599
    %v754 = vpack.c.b16 %v607, %v600
    %v755 = vpack.c.b16 %v608, %v601
    %v756 = vpack.c.b16 %v609, %v602
    %v757 = vpack.c.b16 %v610, %v603
    %v758 = vpack.c.b16 %v611, %v604
    %v759 = vpack.c.b16 %v619, %v612
    %v760 = vpack.c.b16 %v620, %v613
    %v761 = vpack.c.b16 %v621, %v614
    %v762 = vpack.c.b16 %v622, %v615
    %v763 = vpack.c.b16 %v623, %v616
    %v764 = vpack.c.b16 %v624, %v617
    %v765 = vpack.c.b16 %v625, %v618
    %v766 = vpack.c.b16 %v633, %v626
    %v767 = vpack.c.b16 %v634, %v627
    %v768 = vpack.c.b16 %v635, %v628
    %v769 = vpack.c.b16 %v636, %v629
    %v770 = vpack.c.b16 %v637, %v630
    %v771 = vpack.c.b16 %v638, %v631
    %v772 = vpack.c.b16 %v639, %v632
    %v773 = vpack.c.b16 %v647, %v640
    %v774 = vpack.c.b16 %v648, %v641
    %v775 = vpack.c.b16 %v649, %v642
    %v776 = vpack.c.b16 %v650, %v643
    %v777 = vpack.c.b16 %v651, %v644
    %v778 = vpack.c.b16 %v652, %v645
    %v779 = vpack.c.b16 %v653, %v646
    %v780 = vpack.c.b16 %v661, %v654
    %v781 = vpack.c.b16 %v662, %v655
    %v782 = vpack.c.b16 %v663, %v656
    %v783 = vpack.c.b16 %v664, %v657
    %v784 = vpack.c.b16 %v665, %v658
    %v785 = vpack.c.b16 %v666, %v659
    %v786 = vpack.c.b16 %v667, %v660
    %v787 = vpack.c.b16 %v675, %v668
    %v788 = vpack.c.b16 %v676, %v669
    %v789 = vpack.c.b16 %v677, %v670
    %v790 = vpack.c.b16 %v678, %v671
    %v791 = vpack.c.b16 %v679, %v672
    %v792 = vpack.c.b16 %v680, %v673
    %v793 = vpack.c.b16 %v681, %v674
    %906 = vmatpush.bf16.msra.mxu0 %v731
    %907 = vmatpush.bf16.msra.mxu0 %v724
    %908 = vmatpush.bf16.msra.mxu0 %v717
    %909 = vmatpush.bf16.msra.mxu0 %v710
    %910 = vmatpush.bf16.msra.mxu0 %v703
    %911 = vmatpush.bf16.msra.mxu0 %v696
    %912 = vmatpush.bf16.msra.mxu0 %v689
    %913 = vmatpush.bf16.msra.mxu0 %v682
    %914 = vmatmul.bf16.gmra.mxu0 %v184
    %v915 = vpop.f32.mrf.mxu0
    %v916 = vadd.f32 %v316, %v915
    %v917 = vpop.f32.mrf.mxu0
    %918 = vdwg.mxu0
    %919 = vmatpush.bf16.msra.mxu0 %v787
    %920 = vmatpush.bf16.msra.mxu0 %v780
    %921 = vmatpush.bf16.msra.mxu0 %v773
    %922 = vmatpush.bf16.msra.mxu0 %v766
    %923 = vmatpush.bf16.msra.mxu0 %v759
    %924 = vmatpush.bf16.msra.mxu0 %v752
    %925 = vmatpush.bf16.msra.mxu0 %v745
    %926 = vmatpush.bf16.msra.mxu0 %v738
    %927 = vmatmul.bf16.gmra.mxu0 %v185
    %v928 = vpop.f32.mrf.mxu0
    %v929 = vadd.f32 %v916, %v928
    %v930 = vpop.f32.mrf.mxu0
    %931 = vdwg.mxu0
    %932 = vmatpush.bf16.msra.mxu0 %v732
    %933 = vmatpush.bf16.msra.mxu0 %v725
    %934 = vmatpush.bf16.msra.mxu0 %v718
    %935 = vmatpush.bf16.msra.mxu0 %v711
    %936 = vmatpush.bf16.msra.mxu0 %v704
    %937 = vmatpush.bf16.msra.mxu0 %v697
    %938 = vmatpush.bf16.msra.mxu0 %v690
    %939 = vmatpush.bf16.msra.mxu0 %v683
    %940 = vmatmul.bf16.gmra.mxu0 %v184
    %v941 = vpop.f32.mrf.mxu0
    %v942 = vadd.f32 %v317, %v941
    %v943 = vpop.f32.mrf.mxu0
    %944 = vdwg.mxu0
    %945 = vmatpush.bf16.msra.mxu0 %v788
    %946 = vmatpush.bf16.msra.mxu0 %v781
    %947 = vmatpush.bf16.msra.mxu0 %v774
    %948 = vmatpush.bf16.msra.mxu0 %v767
    %949 = vmatpush.bf16.msra.mxu0 %v760
    %950 = vmatpush.bf16.msra.mxu0 %v753
    %951 = vmatpush.bf16.msra.mxu0 %v746
    %952 = vmatpush.bf16.msra.mxu0 %v739
    %953 = vmatmul.bf16.gmra.mxu0 %v185
    %v954 = vpop.f32.mrf.mxu0
    %v955 = vadd.f32 %v942, %v954
    %v956 = vpop.f32.mrf.mxu0
    %957 = vdwg.mxu0
    %958 = vmatpush.bf16.msra.mxu0 %v733
    %959 = vmatpush.bf16.msra.mxu0 %v726
    %960 = vmatpush.bf16.msra.mxu0 %v719
    %961 = vmatpush.bf16.msra.mxu0 %v712
    %962 = vmatpush.bf16.msra.mxu0 %v705
    %963 = vmatpush.bf16.msra.mxu0 %v698
    %964 = vmatpush.bf16.msra.mxu0 %v691
    %965 = vmatpush.bf16.msra.mxu0 %v684
    %966 = vmatmul.bf16.gmra.mxu0 %v184
    %v967 = vpop.f32.mrf.mxu0
    %v968 = vadd.f32 %v318, %v967
    %v969 = vpop.f32.mrf.mxu0
    %970 = vdwg.mxu0
    %971 = vmatpush.bf16.msra.mxu0 %v789
    %972 = vmatpush.bf16.msra.mxu0 %v782
    %973 = vmatpush.bf16.msra.mxu0 %v775
    %974 = vmatpush.bf16.msra.mxu0 %v768
    %975 = vmatpush.bf16.msra.mxu0 %v761
    %976 = vmatpush.bf16.msra.mxu0 %v754
    %977 = vmatpush.bf16.msra.mxu0 %v747
    %978 = vmatpush.bf16.msra.mxu0 %v740
    %979 = vmatmul.bf16.gmra.mxu0 %v185
    %v980 = vpop.f32.mrf.mxu0
    %v981 = vadd.f32 %v968, %v980
    %v982 = vpop.f32.mrf.mxu0
    %983 = vdwg.mxu0
    %984 = vmatpush.bf16.msra.mxu0 %v734
    %985 = vmatpush.bf16.msra.mxu0 %v727
    %986 = vmatpush.bf16.msra.mxu0 %v720
    %987 = vmatpush.bf16.msra.mxu0 %v713
    %988 = vmatpush.bf16.msra.mxu0 %v706
    %989 = vmatpush.bf16.msra.mxu0 %v699
    %990 = vmatpush.bf16.msra.mxu0 %v692
    %991 = vmatpush.bf16.msra.mxu0 %v685
    %992 = vmatmul.bf16.gmra.mxu0 %v184
    %v993 = vpop.f32.mrf.mxu0
    %v994 = vadd.f32 %v319, %v993
    %v995 = vpop.f32.mrf.mxu0
    %996 = vdwg.mxu0
    %997 = vmatpush.bf16.msra.mxu0 %v790
    %998 = vmatpush.bf16.msra.mxu0 %v783
    %999 = vmatpush.bf16.msra.mxu0 %v776
    %1000 = vmatpush.bf16.msra.mxu0 %v769
    %1001 = vmatpush.bf16.msra.mxu0 %v762
    %1002 = vmatpush.bf16.msra.mxu0 %v755
    %1003 = vmatpush.bf16.msra.mxu0 %v748
    %1004 = vmatpush.bf16.msra.mxu0 %v741
    %1005 = vmatmul.bf16.gmra.mxu0 %v185
    %v1006 = vpop.f32.mrf.mxu0
    %v1007 = vadd.f32 %v994, %v1006
    %v1008 = vpop.f32.mrf.mxu0
    %1009 = vdwg.mxu0
    %1010 = vmatpush.bf16.msra.mxu0 %v735
    %1011 = vmatpush.bf16.msra.mxu0 %v728
    %1012 = vmatpush.bf16.msra.mxu0 %v721
    %1013 = vmatpush.bf16.msra.mxu0 %v714
    %1014 = vmatpush.bf16.msra.mxu0 %v707
    %1015 = vmatpush.bf16.msra.mxu0 %v700
    %1016 = vmatpush.bf16.msra.mxu0 %v693
    %1017 = vmatpush.bf16.msra.mxu0 %v686
    %1018 = vmatmul.bf16.gmra.mxu0 %v184
    %v1019 = vpop.f32.mrf.mxu0
    %v1020 = vadd.f32 %v320, %v1019
    %v1021 = vpop.f32.mrf.mxu0
    %1022 = vdwg.mxu0
    %1023 = vmatpush.bf16.msra.mxu0 %v791
    %1024 = vmatpush.bf16.msra.mxu0 %v784
    %1025 = vmatpush.bf16.msra.mxu0 %v777
    %1026 = vmatpush.bf16.msra.mxu0 %v770
    %1027 = vmatpush.bf16.msra.mxu0 %v763
    %1028 = vmatpush.bf16.msra.mxu0 %v756
    %1029 = vmatpush.bf16.msra.mxu0 %v749
    %1030 = vmatpush.bf16.msra.mxu0 %v742
    %1031 = vmatmul.bf16.gmra.mxu0 %v185
    %v1032 = vpop.f32.mrf.mxu0
    %v1033 = vadd.f32 %v1020, %v1032
    %v1034 = vpop.f32.mrf.mxu0
    %1035 = vdwg.mxu0
    %1036 = vmatpush.bf16.msra.mxu0 %v736
    %1037 = vmatpush.bf16.msra.mxu0 %v729
    %1038 = vmatpush.bf16.msra.mxu0 %v722
    %1039 = vmatpush.bf16.msra.mxu0 %v715
    %1040 = vmatpush.bf16.msra.mxu0 %v708
    %1041 = vmatpush.bf16.msra.mxu0 %v701
    %1042 = vmatpush.bf16.msra.mxu0 %v694
    %1043 = vmatpush.bf16.msra.mxu0 %v687
    %1044 = vmatmul.bf16.gmra.mxu0 %v184
    %v1045 = vpop.f32.mrf.mxu0
    %v1046 = vadd.f32 %v321, %v1045
    %v1047 = vpop.f32.mrf.mxu0
    %1048 = vdwg.mxu0
    %1049 = vmatpush.bf16.msra.mxu0 %v792
    %1050 = vmatpush.bf16.msra.mxu0 %v785
    %1051 = vmatpush.bf16.msra.mxu0 %v778
    %1052 = vmatpush.bf16.msra.mxu0 %v771
    %1053 = vmatpush.bf16.msra.mxu0 %v764
    %1054 = vmatpush.bf16.msra.mxu0 %v757
    %1055 = vmatpush.bf16.msra.mxu0 %v750
    %1056 = vmatpush.bf16.msra.mxu0 %v743
    %1057 = vmatmul.bf16.gmra.mxu0 %v185
    %v1058 = vpop.f32.mrf.mxu0
    %v1059 = vadd.f32 %v1046, %v1058
    %v1060 = vpop.f32.mrf.mxu0
    %1061 = vdwg.mxu0
    %1062 = vmatpush.bf16.msra.mxu0 %v737
    %1063 = vmatpush.bf16.msra.mxu0 %v730
    %1064 = vmatpush.bf16.msra.mxu0 %v723
    %1065 = vmatpush.bf16.msra.mxu0 %v716
    %1066 = vmatpush.bf16.msra.mxu0 %v709
    %1067 = vmatpush.bf16.msra.mxu0 %v702
    %1068 = vmatpush.bf16.msra.mxu0 %v695
    %1069 = vmatpush.bf16.msra.mxu0 %v688
    %1070 = vmatmul.bf16.gmra.mxu0 %v184
    %v1071 = vpop.f32.mrf.mxu0
    %v1072 = vadd.f32 %v322, %v1071
    %v1073 = vpop.f32.mrf.mxu0
    %1074 = vdwg.mxu0
    %1075 = vmatpush.bf16.msra.mxu0 %v793
    %1076 = vmatpush.bf16.msra.mxu0 %v786
    %1077 = vmatpush.bf16.msra.mxu0 %v779
    %1078 = vmatpush.bf16.msra.mxu0 %v772
    %1079 = vmatpush.bf16.msra.mxu0 %v765
    %1080 = vmatpush.bf16.msra.mxu0 %v758
    %1081 = vmatpush.bf16.msra.mxu0 %v751
    %1082 = vmatpush.bf16.msra.mxu0 %v744
    %1083 = vmatmul.bf16.gmra.mxu0 %v185
    %v1084 = vpop.f32.mrf.mxu0
    %v1085 = vadd.f32 %v1072, %v1084
    %v1086 = vpop.f32.mrf.mxu0
    %1087 = vdwg.mxu0
    %v1088 = vtanh.pop %v929
    %v1089 = vtanh.pop %v955
    %v1090 = vtanh.pop %v981
    %v1091 = vtanh.pop %v1007
    %v1092 = vtanh.pop %v1033
    %v1093 = vtanh.pop %v1059
    %v1094 = vtanh.pop %v1085
    %v1095 = vpack.c.bf16 %v1089, %v1088
    %v1096 = vpack.c.bf16 %v1091, %v1090
    %v1097 = vpack.c.bf16 %v1093, %v1092
    %v1098 = vpack.c.bf16 %v1094, %v1094
    %1099 = vst [vmem:[#allocation7] sm:$0xff] %v1095
    %1100 = vst [vmem:[#allocation7 + $0x8] sm:$0xff] %v1096
    %1101 = vst [vmem:[#allocation7 + $0x10] sm:$0xff] %v1097
    %1102 = vst [vmem:[#allocation7 + $0x18] sm:$0xf] %v1098
    // Predicated region
    $region30: #{generator_forward.1} parent=1 // pred_check
      _
    $region31: #{generator_forward.1} parent=1 // pred_check_branch
      %1104 = sbr.rel (0) target = $region33
    $region32: #{generator_forward.1} parent=1 // pred_region
      %1106 = vsyncadd [#allocation4], 0
      %s1108 = sshll.u32 [#allocation7], 4
      %s1109 = int_to_ptr.vmem [resolvable:$true] %s1108
      %s1110 = sshll.u32 %s5, 4
      %s1111 = int_to_ptr.hbm [resolvable:$true] %s1110
      %1113 = dma.vmem_to_hbm [thread:$0]  %s1109, 448, %s1111, [#allocation4]
    $region33: #{generator_forward.1} parent=1 // pred_fallthru
      _
    // Predicated region
    $region34: #{generator_forward.1} parent=1 // pred_check
      _
    $region35: #{generator_forward.1} parent=1 // pred_check_branch
      %1115 = sbr.rel (0) target = $region37
    $region36: #{generator_forward.1} parent=1 // pred_region
      %1117 = dma.done [#allocation4], 448
    $region37: #{generator_forward.1} parent=1 // pred_fallthru
      _
    %1118 = vsyncpa [#allocation3], 1
    %1119 = vsyncpa [#allocation6], 1
    %1120 = vsyncpa [#allocation4], 1

</llo_original>
